<compile_context>
chip_gen: v6e
topology: v6e:2x2x1
jax: 0.10.0
libtpu: 0.0.40
codegen_flags: <defaults>
</compile_context>

<pallas_src>
import math

import jax
import jax.numpy as jnp
from jax.experimental import pallas as pl
from jax.experimental.pallas import tpu as pltpu


def spm_kernel(x_ref, wsq_ref, w1t_ref, w2t_ref, wex_ref, bex_ref, b11_ref, o_ref):
    x = x_ref[...]                                                       # (TB, C*L) lane-dense
    b11 = b11_ref[0, 0]                                                  # scalar from SMEM

    # Channel squeeze as a lane-dense matmul:
    #   s[b, l] = sum_c w11[c] * x[b, c, l]   (W_sq[c*L+l', l] = w11[c] * delta(l', l))
    s = jnp.dot(x, wsq_ref[...], preferred_element_type=jnp.float32) + b11   # (TB, L)

    # Spatial MLP: Linear(L->H, no bias) -> ELU -> Linear(H->L, no bias).
    h = jnp.dot(s, w1t_ref[...], preferred_element_type=jnp.float32)         # (TB, H)
    h = jnp.where(h > 0, h, jnp.exp(jnp.minimum(h, 0.0)) - 1.0)              # ELU (alpha=1)
    t = jnp.dot(h, w2t_ref[...], preferred_element_type=jnp.float32)         # (TB, L)

    # Channel expand + bias + sigmoid, directly in the flattened (C*L) layout:
    #   gate[b, c*L+l] = w12[c] * t[b, l] + b12[c]
    gate = jnp.dot(t, wex_ref[...], preferred_element_type=jnp.float32)      # (TB, C*L)
    gate = gate + bex_ref[...]

    o_ref[...] = (x * jax.nn.sigmoid(gate)).astype(o_ref.dtype)


def spm_forward(x, w11, b11, w1, w2, w12, b12, *, block_b=256):
    """x: (B, C, L); w11: (1, C); b11: (1, 1); w1: (H, L); w2: (L, H);
    w12: (C, 1); b12: (C, 1). Returns (B, C, L)."""
    B, C, L = x.shape
    H = w1.shape[0]
    CL = C * L
    f32 = jnp.float32

    # Lane-dense presentation of x / out: (B, C, L) -> (B, C*L) is a free reshape.
    x2d = x.reshape(B, CL)

    # Batch tiling: many batches per grid step; pad B if needed so TB | B_pad.
    if B <= block_b:
        TB, B_pad = B, B
    else:
        TB = block_b
        B_pad = int(pl.cdiv(B, TB)) * TB
    if B_pad != B:
        x2d = jnp.pad(x2d, ((0, B_pad - B), (0, 0)))

    # Precompute tiny structured weights (wrapper-side, pure JAX).
    eye = jnp.eye(L, dtype=f32)
    w11v = w11.reshape(C).astype(f32)
    w12v = w12.reshape(C).astype(f32)
    b12v = b12.reshape(C).astype(f32)
    wsq = (w11v[:, None, None] * eye[None, :, :]).reshape(CL, L)   # (C*L, L)
    wex = (w12v[None, :, None] * eye[:, None, :]).reshape(L, CL)   # (L, C*L)
    bex = jnp.repeat(b12v, L).reshape(1, CL)                       # (1, C*L)
    w1t = w1.T.astype(f32)                                         # (L, H)
    w2t = w2.T.astype(f32)                                         # (H, L)
    b11s = b11.reshape(1, 1).astype(f32)                           # SMEM scalar

    grid = (B_pad // TB,)

    out2d = pl.pallas_call(
        spm_kernel,
        out_shape=jax.ShapeDtypeStruct((B_pad, CL), x.dtype),
        grid_spec=pltpu.PrefetchScalarGridSpec(
            num_scalar_prefetch=0,
            grid=grid,
            in_specs=[
                pl.BlockSpec((TB, CL), lambda b: (b, 0)),      # x, TB batches per step
                pl.BlockSpec((CL, L), lambda b: (0, 0)),       # squeeze weight
                pl.BlockSpec((L, H), lambda b: (0, 0)),        # fc2[0].weight^T
                pl.BlockSpec((H, L), lambda b: (0, 0)),        # fc2[2].weight^T
                pl.BlockSpec((L, CL), lambda b: (0, 0)),       # expand weight
                pl.BlockSpec((1, CL), lambda b: (0, 0)),       # expand bias
                pl.BlockSpec(memory_space=pltpu.MemorySpace.SMEM),  # b11 scalar
            ],
            out_specs=pl.BlockSpec((TB, CL), lambda b: (b, 0)),
        ),
        compiler_params=pltpu.CompilerParams(
            dimension_semantics=("parallel",),
        ),
    )(x2d, wsq, w1t, w2t, wex, bex, b11s)

    return out2d[:B].reshape(B, C, L)


def spm_reference(x, w11, b11, w1, w2, w12, b12):
    s = jnp.einsum("oc,bcl->bol", w11, x) + b11[0, 0]           # (B,1,L)
    h = jnp.einsum("bol,hl->boh", s, w1)                        # Linear(L->H)
    h = jnp.where(h > 0, h, jnp.exp(jnp.minimum(h, 0.0)) - 1.0)
    t = jnp.einsum("boh,lh->bol", h, w2)                        # Linear(H->L)
    y = jax.nn.sigmoid(w12[None, :, :] * t + b12[None, :, :])   # (B,C,L)
    return x * y


if __name__ == "__main__":
    # Shapes consistent with the module: channel=C, input_size=L, reduction=4.
    B, C, L, reduction = 2, 16, 16, 4
    H = math.ceil(L // reduction)  # == 4

    key = jax.random.PRNGKey(0)
    kx, k11w, k11b, kf1, kf2, k12w, k12b, kx2 = jax.random.split(key, 8)

    x = jax.random.normal(kx, (B, C, L), dtype=jnp.float32)

    # Deterministic synthetic parameters (shapes follow the PyTorch module).
    w11 = jax.random.normal(k11w, (1, C), dtype=jnp.float32) * 0.1   # Conv1d(C,1,1).weight squeezed
    b11 = jax.random.normal(k11b, (1, 1), dtype=jnp.float32) * 0.1   # Conv1d(C,1,1).bias
    w1 = jax.random.normal(kf1, (H, L), dtype=jnp.float32) * 0.1     # Linear(L,H,bias=False).weight
    w2 = jax.random.normal(kf2, (L, H), dtype=jnp.float32) * 0.1     # Linear(H,L,bias=False).weight
    w12 = jax.random.normal(k12w, (C, 1), dtype=jnp.float32) * 0.1   # Conv1d(1,C,1).weight squeezed
    b12 = jax.random.normal(k12b, (C, 1), dtype=jnp.float32) * 0.1   # Conv1d(1,C,1).bias

    # Case 1: tiny batch (single grid step, block == full batch).
    out = jax.block_until_ready(spm_forward(x, w11, b11, w1, w2, w12, b12))
    ref = spm_reference(x, w11, b11, w1, w2, w12, b12)
    assert out.shape == (B, C, L)
    assert jnp.allclose(out, ref, atol=2e-5, rtol=2e-5), "mismatch vs reference (case 1)"

    # Case 2: larger batch with a small batch tile, exercising the multi-step
    # grid and the batch-padding path.
    B2 = 20
    x2 = jax.random.normal(kx2, (B2, C, L), dtype=jnp.float32)
    out2 = jax.block_until_ready(
        spm_forward(x2, w11, b11, w1, w2, w12, b12, block_b=8))
    ref2 = spm_reference(x2, w11, b11, w1, w2, w12, b12)
    assert out2.shape == (B2, C, L)
    assert jnp.allclose(out2, ref2, atol=2e-5, rtol=2e-5), "mismatch vs reference (case 2)"

    print("KERNEL_OK")
</pallas_src>

<mosaic_0001>
module attributes {stable_mosaic.version = 11 : i64} {
  func.func @spm_kernel(%arg0: i32, %arg1: memref<2x256xf32, #tpu.memory_space<vmem>>, %arg2: memref<256x16xf32, #tpu.memory_space<vmem>>, %arg3: memref<16x4xf32, #tpu.memory_space<vmem>>, %arg4: memref<4x16xf32, #tpu.memory_space<vmem>>, %arg5: memref<16x256xf32, #tpu.memory_space<vmem>>, %arg6: memref<1x256xf32, #tpu.memory_space<vmem>>, %arg7: memref<1x1xf32, #tpu.memory_space<smem>>, %arg8: memref<2x256xf32, #tpu.memory_space<vmem>>) attributes {dimension_semantics = [#tpu.dimension_semantics<parallel>], iteration_bounds = array<i64: 1>, scalar_prefetch = 0 : i64, scratch_operands = 0 : i64, tpu.core_type = #tpu.core_type<tc>, window_params = [{transform_indices = @transform_0, window_bounds = array<i64: 2, 256>}, {pipeline_mode = #tpu.pipeline_mode<synchronous>, transform_indices = @transform_1, window_bounds = array<i64: 256, 16>}, {pipeline_mode = #tpu.pipeline_mode<synchronous>, transform_indices = @transform_2, window_bounds = array<i64: 16, 4>}, {pipeline_mode = #tpu.pipeline_mode<synchronous>, transform_indices = @transform_3, window_bounds = array<i64: 4, 16>}, {pipeline_mode = #tpu.pipeline_mode<synchronous>, transform_indices = @transform_4, window_bounds = array<i64: 16, 256>}, {pipeline_mode = #tpu.pipeline_mode<synchronous>, transform_indices = @transform_5, window_bounds = array<i64: 1, 256>}, {transform_indices = @transform_6, window_bounds = array<i64: 1, 1>}, {transform_indices = @transform_7, window_bounds = array<i64: 2, 256>}]} {
    %c0 = arith.constant 0 : index
    %c0_0 = arith.constant 0 : index
    %0 = vector.load %arg1[%c0, %c0_0] : memref<2x256xf32, #tpu.memory_space<vmem>>, vector<2x256xf32>
    %c0_1 = arith.constant 0 : index
    %c0_2 = arith.constant 0 : index
    %1 = memref.load %arg7[%c0_1, %c0_2] : memref<1x1xf32, #tpu.memory_space<smem>>
    %c0_3 = arith.constant 0 : index
    %c0_4 = arith.constant 0 : index
    %2 = vector.load %arg2[%c0_3, %c0_4] : memref<256x16xf32, #tpu.memory_space<vmem>>, vector<256x16xf32>
    %cst = arith.constant dense<0.000000e+00> : vector<2x16xf32>
    %3 = tpu.matmul %0, %2, %cst {dimension_numbers = #tpu.dot_dimension_numbers<[1], [0], [0], [1], [0, 0, 1, 1], [], []>} : vector<2x256xf32>, vector<256x16xf32>, vector<2x16xf32> -> vector<2x16xf32>
    %4 = vector.broadcast %1 : f32 to vector<2x16xf32>
    %5 = arith.addf %3, %4 : vector<2x16xf32>
    %c0_5 = arith.constant 0 : index
    %c0_6 = arith.constant 0 : index
    %6 = vector.load %arg3[%c0_5, %c0_6] : memref<16x4xf32, #tpu.memory_space<vmem>>, vector<16x4xf32>
    %cst_7 = arith.constant dense<0.000000e+00> : vector<2x4xf32>
    %7 = tpu.matmul %5, %6, %cst_7 {dimension_numbers = #tpu.dot_dimension_numbers<[1], [0], [0], [1], [0, 0, 1, 1], [], []>} : vector<2x16xf32>, vector<16x4xf32>, vector<2x4xf32> -> vector<2x4xf32>
    %cst_8 = arith.constant 0.000000e+00 : f32
    %8 = vector.broadcast %cst_8 : f32 to vector<2x4xf32>
    %9 = arith.cmpf ogt, %7, %8 : vector<2x4xf32>
    %cst_9 = arith.constant 0.000000e+00 : f32
    %10 = vector.broadcast %cst_9 : f32 to vector<2x4xf32>
    %11 = arith.minimumf %7, %10 : vector<2x4xf32>
    %12 = math.exp %11 : vector<2x4xf32>
    %cst_10 = arith.constant 1.000000e+00 : f32
    %13 = vector.broadcast %cst_10 : f32 to vector<2x4xf32>
    %14 = arith.subf %12, %13 : vector<2x4xf32>
    %15 = arith.select %9, %7, %14 : vector<2x4xi1>, vector<2x4xf32>
    %c0_11 = arith.constant 0 : index
    %c0_12 = arith.constant 0 : index
    %16 = vector.load %arg4[%c0_11, %c0_12] : memref<4x16xf32, #tpu.memory_space<vmem>>, vector<4x16xf32>
    %cst_13 = arith.constant dense<0.000000e+00> : vector<2x16xf32>
    %17 = tpu.matmul %15, %16, %cst_13 {dimension_numbers = #tpu.dot_dimension_numbers<[1], [0], [0], [1], [0, 0, 1, 1], [], []>} : vector<2x4xf32>, vector<4x16xf32>, vector<2x16xf32> -> vector<2x16xf32>
    %c0_14 = arith.constant 0 : index
    %c0_15 = arith.constant 0 : index
    %18 = vector.load %arg5[%c0_14, %c0_15] : memref<16x256xf32, #tpu.memory_space<vmem>>, vector<16x256xf32>
    %cst_16 = arith.constant dense<0.000000e+00> : vector<2x256xf32>
    %19 = tpu.matmul %17, %18, %cst_16 {dimension_numbers = #tpu.dot_dimension_numbers<[1], [0], [0], [1], [0, 0, 1, 1], [], []>} : vector<2x16xf32>, vector<16x256xf32>, vector<2x256xf32> -> vector<2x256xf32>
    %c0_17 = arith.constant 0 : index
    %c0_18 = arith.constant 0 : index
    %20 = vector.load %arg6[%c0_17, %c0_18] : memref<1x256xf32, #tpu.memory_space<vmem>>, vector<1x256xf32>
    %21 = vector.broadcast %20 : vector<1x256xf32> to vector<2x256xf32>
    %22 = arith.addf %19, %21 : vector<2x256xf32>
    %23 = arith.negf %22 : vector<2x256xf32>
    %24 = math.exp %23 : vector<2x256xf32>
    %cst_19 = arith.constant 1.000000e+00 : f32
    %25 = vector.broadcast %cst_19 : f32 to vector<2x256xf32>
    %26 = arith.addf %25, %24 : vector<2x256xf32>
    %27 = arith.divf %25, %26 : vector<2x256xf32>
    %28 = arith.mulf %0, %27 : vector<2x256xf32>
    %c0_20 = arith.constant 0 : index
    %c0_21 = arith.constant 0 : index
    %29 = vector.load %arg8[%c0_20, %c0_21] : memref<2x256xf32, #tpu.memory_space<vmem>>, vector<2x256xf32>
    tpu.vector_store %arg8[%c0_20, %c0_21], %28 {strides = array<i32>} : memref<2x256xf32, #tpu.memory_space<vmem>>, vector<2x256xf32>,
    return
  }
  func.func @transform_0(%arg0: i32) -> (i32, i32) {
    %c0_i32 = arith.constant 0 : i32
    %c0_i32_0 = arith.constant 0 : i32
    return %arg0, %c0_i32 : i32, i32
  }
  func.func @transform_1(%arg0: i32) -> (i32, i32) {
    %c0_i32 = arith.constant 0 : i32
    %c0_i32_0 = arith.constant 0 : i32
    %c0_i32_1 = arith.constant 0 : i32
    return %c0_i32, %c0_i32_0 : i32, i32
  }
  func.func @transform_2(%arg0: i32) -> (i32, i32) {
    %c0_i32 = arith.constant 0 : i32
    %c0_i32_0 = arith.constant 0 : i32
    %c0_i32_1 = arith.constant 0 : i32
    return %c0_i32, %c0_i32_0 : i32, i32
  }
  func.func @transform_3(%arg0: i32) -> (i32, i32) {
    %c0_i32 = arith.constant 0 : i32
    %c0_i32_0 = arith.constant 0 : i32
    %c0_i32_1 = arith.constant 0 : i32
    return %c0_i32, %c0_i32_0 : i32, i32
  }
  func.func @transform_4(%arg0: i32) -> (i32, i32) {
    %c0_i32 = arith.constant 0 : i32
    %c0_i32_0 = arith.constant 0 : i32
    %c0_i32_1 = arith.constant 0 : i32
    return %c0_i32, %c0_i32_0 : i32, i32
  }
  func.func @transform_5(%arg0: i32) -> (i32, i32) {
    %c0_i32 = arith.constant 0 : i32
    %c0_i32_0 = arith.constant 0 : i32
    %c0_i32_1 = arith.constant 0 : i32
    return %c0_i32, %c0_i32_0 : i32, i32
  }
  func.func @transform_6(%arg0: i32) -> (i32, i32) {
    %c0_i32 = arith.constant 0 : i32
    %c0_i32_0 = arith.constant 0 : i32
    %c0_i32_1 = arith.constant 0 : i32
    return %c0_i32, %c0_i32_0 : i32, i32
  }
  func.func @transform_7(%arg0: i32) -> (i32, i32) {
    %c0_i32 = arith.constant 0 : i32
    %c0_i32_0 = arith.constant 0 : i32
    return %arg0, %c0_i32 : i32, i32
  }
}

</mosaic_0001>

<llo_original>
// kernel: tpu_custom_call.1
$region0: #{tpu_custom_call.1}
  #allocation0 [shape = 'u32[]', space=smem, size = 0x4, offset = 0x4, fixed_abs, tag = 'smem constant byte address 0x4 - core index']
  #allocation1 [shape = 'u32[144,128]{1,0:T(1,128)}', space=vmem, size = 0x12000, scoped, tag = 'internal scratch']
  #allocation2 [shape = 'f32[1,1]{1,0:T(1,128)S(6)}', space=smem, size = 0x200, scoped, tag = 'scoped memory for tpu_custom_call.1']
  %s0 = inlined_call_operand.vmem [shape: f32[2,256], index: 0, kind: input, shape index: {}]
  %s1 = inlined_call_operand.vmem [shape: f32[256,16], index: 1, kind: input, shape index: {}]
  %s2 = inlined_call_operand.vmem [shape: f32[16,4], index: 2, kind: input, shape index: {}]
  %s3 = inlined_call_operand.vmem [shape: f32[4,16], index: 3, kind: input, shape index: {}]
  %s4 = inlined_call_operand.vmem [shape: f32[16,256], index: 4, kind: input, shape index: {}]
  %s5 = inlined_call_operand.vmem [shape: f32[1,256], index: 5, kind: input, shape index: {}]
  %s6 = inlined_call_operand.<no memory space> [shape: f32[1,1], index: 6, kind: input, shape index: {}]
  %s7 = inlined_call_operand.hbm [shape: f32[2,256], index: 7, kind: output, shape index: {}]
  %s8 = sld [smem:[#allocation0]]
  $region38: #{tpu_custom_call.1} parent=0
    _
  %s10 = ssub.s32 1, %s8
  %s11 = scalar_select 0, %s10, %s8
  %12 = sst [smem:[#allocation2]] %s6
  $region1: #{tpu_custom_call.1} parent=0
    #allocation3 [shape = 'u8[2048]{0}', space=vmem, size = 0x800, scoped, tag = 'output window, operand 0, single buffered']
    #allocation4 [shape = 's32[1]{0}', space=sflag, size = 0x4, scoped, tag = 'scoped memory for tpu_custom_call.1']
    %13 = vsyncpa [#allocation4], 0
    // Predicated region
    $region2: #{tpu_custom_call.1} parent=1 // pred_check
      _
    $region3: #{tpu_custom_call.1} parent=1 // pred_check_branch
      %15 = sbr.rel (0) target = $region5
    $region4: #{tpu_custom_call.1} parent=1 // pred_region
      _
    $region5: #{tpu_custom_call.1} parent=1 // pred_fallthru
      _
    // Predicated region
    $region6: #{tpu_custom_call.1} parent=1 // pred_check
      _
    $region7: #{tpu_custom_call.1} parent=1 // pred_check_branch
      %17 = sbr.rel (0) target = $region9
    $region8: #{tpu_custom_call.1} parent=1 // pred_region
      _
    $region9: #{tpu_custom_call.1} parent=1 // pred_fallthru
      _
    // Predicated region
    $region10: #{tpu_custom_call.1} parent=1 // pred_check
      _
    $region11: #{tpu_custom_call.1} parent=1 // pred_check_branch
      %19 = sbr.rel (0) target = $region13
    $region12: #{tpu_custom_call.1} parent=1 // pred_region
      _
    $region13: #{tpu_custom_call.1} parent=1 // pred_fallthru
      _
    // Predicated region
    $region14: #{tpu_custom_call.1} parent=1 // pred_check
      _
    $region15: #{tpu_custom_call.1} parent=1 // pred_check_branch
      %21 = sbr.rel (0) target = $region17
    $region16: #{tpu_custom_call.1} parent=1 // pred_region
      _
    $region17: #{tpu_custom_call.1} parent=1 // pred_fallthru
      _
    // Predicated region
    $region18: #{tpu_custom_call.1} parent=1 // pred_check
      _
    $region19: #{tpu_custom_call.1} parent=1 // pred_check_branch
      %23 = sbr.rel (0) target = $region21
    $region20: #{tpu_custom_call.1} parent=1 // pred_region
      _
    $region21: #{tpu_custom_call.1} parent=1 // pred_fallthru
      _
    // Predicated region
    $region22: #{tpu_custom_call.1} parent=1 // pred_check
      _
    $region23: #{tpu_custom_call.1} parent=1 // pred_check_branch
      %25 = sbr.rel (0) target = $region25
    $region24: #{tpu_custom_call.1} parent=1 // pred_region
      _
    $region25: #{tpu_custom_call.1} parent=1 // pred_fallthru
      _
    // Predicated region
    $region26: #{tpu_custom_call.1} parent=1 // pred_check
      _
    $region27: #{tpu_custom_call.1} parent=1 // pred_check_branch
      %27 = sbr.rel (0) target = $region29
    $region28: #{tpu_custom_call.1} parent=1 // pred_region
      _
    $region29: #{tpu_custom_call.1} parent=1 // pred_fallthru
      _
    %v28 = vld [vmem:[%s0] sm:$0xf]
    %s29 = sld [smem:[#allocation2]]
    %v30 = vld [vmem:[%s1] sm:$0xff]
    %v31 = vld [vmem:[%s1 + $0x8] sm:$0xff]
    %v32 = vld [vmem:[%s1 + $0x10] sm:$0xff]
    %v33 = vld [vmem:[%s1 + $0x18] sm:$0xff]
    %v34 = vld [vmem:[%s1 + $0x20] sm:$0xff]
    %v35 = vld [vmem:[%s1 + $0x28] sm:$0xff]
    %v36 = vld [vmem:[%s1 + $0x30] sm:$0xff]
    %v37 = vld [vmem:[%s1 + $0x38] sm:$0xff]
    %v38 = vld [vmem:[%s1 + $0x40] sm:$0xff]
    %v39 = vld [vmem:[%s1 + $0x48] sm:$0xff]
    %v40 = vld [vmem:[%s1 + $0x50] sm:$0xff]
    %v41 = vld [vmem:[%s1 + $0x58] sm:$0xff]
    %v42 = vld [vmem:[%s1 + $0x60] sm:$0xff]
    %v43 = vld [vmem:[%s1 + $0x68] sm:$0xff]
    %v44 = vld [vmem:[%s1 + $0x70] sm:$0xff]
    %v45 = vld [vmem:[%s1 + $0x78] sm:$0xff]
    %v46 = vld [vmem:[%s1 + $0x80] sm:$0xff]
    %v47 = vld [vmem:[%s1 + $0x88] sm:$0xff]
    %v48 = vld [vmem:[%s1 + $0x90] sm:$0xff]
    %v49 = vld [vmem:[%s1 + $0x98] sm:$0xff]
    %v50 = vld [vmem:[%s1 + $0xa0] sm:$0xff]
    %v51 = vld [vmem:[%s1 + $0xa8] sm:$0xff]
    %v52 = vld [vmem:[%s1 + $0xb0] sm:$0xff]
    %v53 = vld [vmem:[%s1 + $0xb8] sm:$0xff]
    %v54 = vld [vmem:[%s1 + $0xc0] sm:$0xff]
    %v55 = vld [vmem:[%s1 + $0xc8] sm:$0xff]
    %v56 = vld [vmem:[%s1 + $0xd0] sm:$0xff]
    %v57 = vld [vmem:[%s1 + $0xd8] sm:$0xff]
    %v58 = vld [vmem:[%s1 + $0xe0] sm:$0xff]
    %v59 = vld [vmem:[%s1 + $0xe8] sm:$0xff]
    %v60 = vld [vmem:[%s1 + $0xf0] sm:$0xff]
    %v61 = vld [vmem:[%s1 + $0xf8] sm:$0xff]
    %v62 = vstv %s29
    %v65 = vunpack.c.l.s4 1983009808
    %v66 = vunpack.c.0.s8 %v65
    %v67 = vlaneseq
    %v68 = vshrl.u32 %v67, 7
    %v69 = vsub.s32 %v66, %v68
    %v70 = vrot.slane %v28, %v69
    %v71 = vcombine.high %v70, %v70
    %74 = vmatprep.subr.mxu0 0.0
    %75 = vmatpush1.msra.mxu0 %v45
    %76 = vmatprep.subr.mxu0 0.0
    %77 = vmatpush1.msra.mxu0 %v44
    %78 = vmatprep.subr.mxu0 0.0
    %79 = vmatpush1.msra.mxu0 %v43
    %80 = vmatprep.subr.mxu0 0.0
    %81 = vmatpush1.msra.mxu0 %v42
    %82 = vmatprep.subr.mxu0 0.0
    %83 = vmatpush1.msra.mxu0 %v41
    %84 = vmatprep.subr.mxu0 0.0
    %85 = vmatpush1.msra.mxu0 %v40
    %86 = vmatprep.subr.mxu0 0.0
    %87 = vmatpush1.msra.mxu0 %v39
    %88 = vmatprep.subr.mxu0 0.0
    %89 = vmatpush1.msra.mxu0 %v38
    %90 = vmatprep.subr.mxu0 0.0
    %91 = vmatpush1.msra.mxu0 %v37
    %92 = vmatprep.subr.mxu0 0.0
    %93 = vmatpush1.msra.mxu0 %v36
    %94 = vmatprep.subr.mxu0 0.0
    %95 = vmatpush1.msra.mxu0 %v35
    %96 = vmatprep.subr.mxu0 0.0
    %97 = vmatpush1.msra.mxu0 %v34
    %98 = vmatprep.subr.mxu0 0.0
    %99 = vmatpush1.msra.mxu0 %v33
    %100 = vmatprep.subr.mxu0 0.0
    %101 = vmatpush1.msra.mxu0 %v32
    %102 = vmatprep.subr.mxu0 0.0
    %103 = vmatpush1.msra.mxu0 %v31
    %104 = vmatprep.subr.mxu0 0.0
    %105 = vmatpush1.msra.mxu0 %v30
    %106 = vmatprep.subr.mxu0 0.0
    %107 = vmatpush2.msra.mxu0 %v61
    %108 = vmatprep.subr.mxu0 0.0
    %109 = vmatpush2.msra.mxu0 %v60
    %110 = vmatprep.subr.mxu0 0.0
    %111 = vmatpush2.msra.mxu0 %v59
    %112 = vmatprep.subr.mxu0 0.0
    %113 = vmatpush2.msra.mxu0 %v58
    %114 = vmatprep.subr.mxu0 0.0
    %115 = vmatpush2.msra.mxu0 %v57
    %116 = vmatprep.subr.mxu0 0.0
    %117 = vmatpush2.msra.mxu0 %v56
    %118 = vmatprep.subr.mxu0 0.0
    %119 = vmatpush2.msra.mxu0 %v55
    %120 = vmatprep.subr.mxu0 0.0
    %121 = vmatpush2.msra.mxu0 %v54
    %122 = vmatprep.subr.mxu0 0.0
    %123 = vmatpush2.msra.mxu0 %v53
    %124 = vmatprep.subr.mxu0 0.0
    %125 = vmatpush2.msra.mxu0 %v52
    %126 = vmatprep.subr.mxu0 0.0
    %127 = vmatpush2.msra.mxu0 %v51
    %128 = vmatprep.subr.mxu0 0.0
    %129 = vmatpush2.msra.mxu0 %v50
    %130 = vmatprep.subr.mxu0 0.0
    %131 = vmatpush2.msra.mxu0 %v49
    %132 = vmatprep.subr.mxu0 0.0
    %133 = vmatpush2.msra.mxu0 %v48
    %134 = vmatprep.subr.mxu0 0.0
    %135 = vmatpush2.msra.mxu0 %v47
    %136 = vmatprep.subr.mxu0 0.0
    %137 = vmatpush2.msra.mxu0 %v46
    %138 = vmatprep.mubr.f32.mxu0 %v71
    %139 = vmatmul.mubr.f32.gmra.mxu0 %v70
    %v140 = vpop.f32.mrf.mxu0
    %v141 = vadd.f32 %v62, %v140
    %v142 = vpop.f32.mrf.mxu0
    %143 = vdwg.mxu0
    %v144 = vld [vmem:[%s2] sm:$0xff]
    %v145 = vld [vmem:[%s2 + $0x8] sm:$0xff]
    %vm146 = vcmask 130048
    %v148 = vsel %vm146, %v141, 0
    %150 = vmatprep.subr.mxu0 0.0
    %151 = vmatpush1.msra.mxu0 0.0
    %152 = vmatprep.subr.mxu0 0.0
    %153 = vmatpush1.msra.mxu0 0.0
    %154 = vmatprep.subr.mxu0 0.0
    %155 = vmatpush1.msra.mxu0 0.0
    %156 = vmatprep.subr.mxu0 0.0
    %157 = vmatpush1.msra.mxu0 0.0
    %158 = vmatprep.subr.mxu0 0.0
    %159 = vmatpush1.msra.mxu0 0.0
    %160 = vmatprep.subr.mxu0 0.0
    %161 = vmatpush1.msra.mxu0 0.0
    %162 = vmatprep.subr.mxu0 0.0
    %163 = vmatpush1.msra.mxu0 0.0
    %164 = vmatprep.subr.mxu0 0.0
    %165 = vmatpush1.msra.mxu0 0.0
    %166 = vmatprep.subr.mxu0 0.0
    %167 = vmatpush1.msra.mxu0 0.0
    %168 = vmatprep.subr.mxu0 0.0
    %169 = vmatpush1.msra.mxu0 0.0
    %170 = vmatprep.subr.mxu0 0.0
    %171 = vmatpush1.msra.mxu0 0.0
    %172 = vmatprep.subr.mxu0 0.0
    %173 = vmatpush1.msra.mxu0 0.0
    %174 = vmatprep.subr.mxu0 0.0
    %175 = vmatpush1.msra.mxu0 0.0
    %176 = vmatprep.subr.mxu0 0.0
    %177 = vmatpush1.msra.mxu0 0.0
    %178 = vmatprep.subr.mxu0 0.0
    %179 = vmatpush1.msra.mxu0 %v145
    %180 = vmatprep.subr.mxu0 0.0
    %181 = vmatpush1.msra.mxu0 %v144
    %182 = vmatprep.subr.mxu0 0.0
    %183 = vmatpush2.msra.mxu0 0.0
    %184 = vmatprep.subr.mxu0 0.0
    %185 = vmatpush2.msra.mxu0 0.0
    %186 = vmatprep.subr.mxu0 0.0
    %187 = vmatpush2.msra.mxu0 0.0
    %188 = vmatprep.subr.mxu0 0.0
    %189 = vmatpush2.msra.mxu0 0.0
    %190 = vmatprep.subr.mxu0 0.0
    %191 = vmatpush2.msra.mxu0 0.0
    %192 = vmatprep.subr.mxu0 0.0
    %193 = vmatpush2.msra.mxu0 0.0
    %194 = vmatprep.subr.mxu0 0.0
    %195 = vmatpush2.msra.mxu0 0.0
    %196 = vmatprep.subr.mxu0 0.0
    %197 = vmatpush2.msra.mxu0 0.0
    %198 = vmatprep.subr.mxu0 0.0
    %199 = vmatpush2.msra.mxu0 0.0
    %200 = vmatprep.subr.mxu0 0.0
    %201 = vmatpush2.msra.mxu0 0.0
    %202 = vmatprep.subr.mxu0 0.0
    %203 = vmatpush2.msra.mxu0 0.0
    %204 = vmatprep.subr.mxu0 0.0
    %205 = vmatpush2.msra.mxu0 0.0
    %206 = vmatprep.subr.mxu0 0.0
    %207 = vmatpush2.msra.mxu0 0.0
    %208 = vmatprep.subr.mxu0 0.0
    %209 = vmatpush2.msra.mxu0 0.0
    %210 = vmatprep.subr.mxu0 0.0
    %211 = vmatpush2.msra.mxu0 0.0
    %212 = vmatprep.subr.mxu0 0.0
    %213 = vmatpush2.msra.mxu0 0.0
    %214 = vmatprep.mubr.f32.mxu0 0.0
    %215 = vmatmul.mubr.f32.gmra.mxu0 %v148
    %v216 = vpop.f32.mrf.mxu0
    %v217 = vadd.f32 0.0, %v216
    %v218 = vpop.f32.mrf.mxu0
    %219 = vdwg.mxu0
    %vm220 = vcmp.gt.f32.partialorder %v217, 0.0
    %v221 = vmin.f32 %v217, 0.0
    %v222 = vmul.f32 %v221, 1.442695
    %v223 = vpow.pop %v222
    %v224 = vsub.f32 %v223, 1.0
    %v225 = vsel %vm220, %v217, %v224
    %v226 = vld [vmem:[%s3] sm:$0xf]
    %vm227 = vcmask 31744
    %v229 = vsel %vm227, %v225, 0
    %vm231 = vcmask 1043456
    %v233 = vsel %vm231, %v226, 0
    %235 = vmatprep.subr.mxu0 0.0
    %236 = vmatpush1.msra.mxu0 0.0
    %237 = vmatprep.subr.mxu0 0.0
    %238 = vmatpush1.msra.mxu0 0.0
    %239 = vmatprep.subr.mxu0 0.0
    %240 = vmatpush1.msra.mxu0 0.0
    %241 = vmatprep.subr.mxu0 0.0
    %242 = vmatpush1.msra.mxu0 0.0
    %243 = vmatprep.subr.mxu0 0.0
    %244 = vmatpush1.msra.mxu0 0.0
    %245 = vmatprep.subr.mxu0 0.0
    %246 = vmatpush1.msra.mxu0 0.0
    %247 = vmatprep.subr.mxu0 0.0
    %248 = vmatpush1.msra.mxu0 0.0
    %249 = vmatprep.subr.mxu0 0.0
    %250 = vmatpush1.msra.mxu0 0.0
    %251 = vmatprep.subr.mxu0 0.0
    %252 = vmatpush1.msra.mxu0 0.0
    %253 = vmatprep.subr.mxu0 0.0
    %254 = vmatpush1.msra.mxu0 0.0
    %255 = vmatprep.subr.mxu0 0.0
    %256 = vmatpush1.msra.mxu0 0.0
    %257 = vmatprep.subr.mxu0 0.0
    %258 = vmatpush1.msra.mxu0 0.0
    %259 = vmatprep.subr.mxu0 0.0
    %260 = vmatpush1.msra.mxu0 0.0
    %261 = vmatprep.subr.mxu0 0.0
    %262 = vmatpush1.msra.mxu0 0.0
    %263 = vmatprep.subr.mxu0 0.0
    %264 = vmatpush1.msra.mxu0 0.0
    %265 = vmatprep.subr.mxu0 0.0
    %266 = vmatpush1.msra.mxu0 %v233
    %267 = vmatprep.subr.mxu0 0.0
    %268 = vmatpush2.msra.mxu0 0.0
    %269 = vmatprep.subr.mxu0 0.0
    %270 = vmatpush2.msra.mxu0 0.0
    %271 = vmatprep.subr.mxu0 0.0
    %272 = vmatpush2.msra.mxu0 0.0
    %273 = vmatprep.subr.mxu0 0.0
    %274 = vmatpush2.msra.mxu0 0.0
    %275 = vmatprep.subr.mxu0 0.0
    %276 = vmatpush2.msra.mxu0 0.0
    %277 = vmatprep.subr.mxu0 0.0
    %278 = vmatpush2.msra.mxu0 0.0
    %279 = vmatprep.subr.mxu0 0.0
    %280 = vmatpush2.msra.mxu0 0.0
    %281 = vmatprep.subr.mxu0 0.0
    %282 = vmatpush2.msra.mxu0 0.0
    %283 = vmatprep.subr.mxu0 0.0
    %284 = vmatpush2.msra.mxu0 0.0
    %285 = vmatprep.subr.mxu0 0.0
    %286 = vmatpush2.msra.mxu0 0.0
    %287 = vmatprep.subr.mxu0 0.0
    %288 = vmatpush2.msra.mxu0 0.0
    %289 = vmatprep.subr.mxu0 0.0
    %290 = vmatpush2.msra.mxu0 0.0
    %291 = vmatprep.subr.mxu0 0.0
    %292 = vmatpush2.msra.mxu0 0.0
    %293 = vmatprep.subr.mxu0 0.0
    %294 = vmatpush2.msra.mxu0 0.0
    %295 = vmatprep.subr.mxu0 0.0
    %296 = vmatpush2.msra.mxu0 0.0
    %297 = vmatprep.subr.mxu0 0.0
    %298 = vmatpush2.msra.mxu0 0.0
    %299 = vmatprep.mubr.f32.mxu0 0.0
    %300 = vmatmul.mubr.f32.gmra.mxu0 %v229
    %v301 = vpop.f32.mrf.mxu0
    %v302 = vadd.f32 0.0, %v301
    %v303 = vpop.f32.mrf.mxu0
    %304 = vdwg.mxu0
    %v305 = vld [vmem:[%s4] sm:$0xff]
    %v306 = vld [vmem:[%s4 + $0x8] sm:$0xff]
    %v307 = vld [vmem:[%s4 + $0x10] sm:$0xff]
    %v308 = vld [vmem:[%s4 + $0x18] sm:$0xff]
    %v309 = vld [vmem:[%s5] sm:$0x3]
    %v311 = vlaneseq
    %v312 = vshrl.u32 %v311, 7
    %v313 = vsub.s32 0, %v312
    %v314 = vrot.slane %v309, %v313
    %v315 = vlaneseq
    %v316 = vshrl.u32 %v315, 7
    %v317 = vsub.s32 1, %v316
    %v318 = vrot.slane %v309, %v317
    %v322 = vsel %vm146, %v302, 0
    %324 = vmatprep.subr.mxu0 0.0
    %325 = vmatpush1.msra.mxu0 0.0
    %326 = vmatprep.subr.mxu0 0.0
    %327 = vmatpush1.msra.mxu0 0.0
    %328 = vmatprep.subr.mxu0 0.0
    %329 = vmatpush1.msra.mxu0 0.0
    %330 = vmatprep.subr.mxu0 0.0
    %331 = vmatpush1.msra.mxu0 0.0
    %332 = vmatprep.subr.mxu0 0.0
    %333 = vmatpush1.msra.mxu0 0.0
    %334 = vmatprep.subr.mxu0 0.0
    %335 = vmatpush1.msra.mxu0 0.0
    %336 = vmatprep.subr.mxu0 0.0
    %337 = vmatpush1.msra.mxu0 0.0
    %338 = vmatprep.subr.mxu0 0.0
    %339 = vmatpush1.msra.mxu0 0.0
    %340 = vmatprep.subr.mxu0 0.0
    %341 = vmatpush1.msra.mxu0 0.0
    %342 = vmatprep.subr.mxu0 0.0
    %343 = vmatpush1.msra.mxu0 0.0
    %344 = vmatprep.subr.mxu0 0.0
    %345 = vmatpush1.msra.mxu0 0.0
    %346 = vmatprep.subr.mxu0 0.0
    %347 = vmatpush1.msra.mxu0 0.0
    %348 = vmatprep.subr.mxu0 0.0
    %349 = vmatpush1.msra.mxu0 0.0
    %350 = vmatprep.subr.mxu0 0.0
    %351 = vmatpush1.msra.mxu0 0.0
    %352 = vmatprep.subr.mxu0 %v308
    %353 = vmatpush1.msra.mxu0 %v307
    %354 = vmatprep.subr.mxu0 %v306
    %355 = vmatpush1.msra.mxu0 %v305
    %356 = vmatprep.subr.mxu0 0.0
    %357 = vmatpush2.msra.mxu0 0.0
    %358 = vmatprep.subr.mxu0 0.0
    %359 = vmatpush2.msra.mxu0 0.0
    %360 = vmatprep.subr.mxu0 0.0
    %361 = vmatpush2.msra.mxu0 0.0
    %362 = vmatprep.subr.mxu0 0.0
    %363 = vmatpush2.msra.mxu0 0.0
    %364 = vmatprep.subr.mxu0 0.0
    %365 = vmatpush2.msra.mxu0 0.0
    %366 = vmatprep.subr.mxu0 0.0
    %367 = vmatpush2.msra.mxu0 0.0
    %368 = vmatprep.subr.mxu0 0.0
    %369 = vmatpush2.msra.mxu0 0.0
    %370 = vmatprep.subr.mxu0 0.0
    %371 = vmatpush2.msra.mxu0 0.0
    %372 = vmatprep.subr.mxu0 0.0
    %373 = vmatpush2.msra.mxu0 0.0
    %374 = vmatprep.subr.mxu0 0.0
    %375 = vmatpush2.msra.mxu0 0.0
    %376 = vmatprep.subr.mxu0 0.0
    %377 = vmatpush2.msra.mxu0 0.0
    %378 = vmatprep.subr.mxu0 0.0
    %379 = vmatpush2.msra.mxu0 0.0
    %380 = vmatprep.subr.mxu0 0.0
    %381 = vmatpush2.msra.mxu0 0.0
    %382 = vmatprep.subr.mxu0 0.0
    %383 = vmatpush2.msra.mxu0 0.0
    %384 = vmatprep.subr.mxu0 0.0
    %385 = vmatpush2.msra.mxu0 0.0
    %386 = vmatprep.subr.mxu0 0.0
    %387 = vmatpush2.msra.mxu0 0.0
    %388 = vmatprep.mubr.f32.mxu0 0.0
    %389 = vmatmul.mubr.f32.gmra.mxu0 %v322
    %v390 = vpop.f32.mrf.mxu0
    %v391 = vadd.f32 %v314, %v390
    %v392 = vpop.f32.mrf.mxu0
    %v393 = vadd.f32 %v318, %v392
    %394 = vdwg.mxu0
    %v395 = vxor.u32 %v391, 2147483648
    %v396 = vxor.u32 %v393, 2147483648
    %v397 = vmul.f32 %v395, 1.442695
    %v398 = vpow.pop %v397
    %v399 = vmul.f32 %v396, 1.442695
    %v400 = vpow.pop %v399
    %v401 = vadd.f32 %v398, 1.0
    %v402 = vadd.f32 %v400, 1.0
    %v403 = vrcp.pop %v401
    %v404 = vmul.f32 1.0, %v403
    %v405 = vrcp.pop %v402
    %v406 = vmul.f32 1.0, %v405
    %v409 = vcombine.low %v404, %v406
    %v411 = vunpack.c.l.s4 1983009808
    %v412 = vunpack.c.0.s8 %v411
    %v413 = vlaneseq
    %v414 = vshrl.u32 %v413, 7
    %v415 = vsub.s32 %v412, %v414
    %v416 = vrot.slane %v409, %v415
    %v418 = vmul.f32 %v28, %v416
    %419 = vst [vmem:[#allocation3] sm:$0xf] %v418
    // Predicated region
    $region30: #{tpu_custom_call.1} parent=1 // pred_check
      _
    $region31: #{tpu_custom_call.1} parent=1 // pred_check_branch
      %421 = sbr.rel (0) target = $region33
    $region32: #{tpu_custom_call.1} parent=1 // pred_region
      %s423 = ssub.s32 64, 64
      %424 = vsyncadd [#allocation4], %s423
      %s426 = sshll.u32 [#allocation3], 4
      %s427 = int_to_ptr.vmem [resolvable:$true] %s426
      %429 = dma.vmem_to_hbm [thread:$0]  %s427, 64, %s7, [#allocation4]
    $region33: #{tpu_custom_call.1} parent=1 // pred_fallthru
      _
    // Predicated region
    $region34: #{tpu_custom_call.1} parent=1 // pred_check
      _
    $region35: #{tpu_custom_call.1} parent=1 // pred_check_branch
      %431 = sbr.rel (0) target = $region37
    $region36: #{tpu_custom_call.1} parent=1 // pred_region
      %432 = dma.done [#allocation4], 64
    $region37: #{tpu_custom_call.1} parent=1 // pred_fallthru
      _
    %433 = vsyncpa [#allocation4], 1

</llo_original>
